<compile_context>
chip_gen: v7x
topology: tpu7x:2x2x1
jax: 0.10.0
libtpu: 0.0.40
codegen_flags: <defaults>
</compile_context>

<pallas_src>
import functools

import jax
import jax.numpy as jnp
from jax.experimental import pallas as pl
from jax.experimental.pallas import tpu as pltpu


def _round_up(n, m):
    return ((n + m - 1) // m) * m


def _mlp_kernel(x_ref, w1_ref, b1_ref, w2_ref, b2_ref, o_ref):
    # fc1: cast x to bf16 in-kernel (inputs arrive as f32 straight from HBM),
    # f32 accumulation on the MXU.
    x_bf = x_ref[...].astype(jnp.bfloat16)
    h = jnp.dot(x_bf, w1_ref[...], preferred_element_type=jnp.float32)
    # Bias add + ReLU in f32 (VPU-native on all generations).
    h = jnp.maximum(h + b1_ref[...], 0.0)
    # fc2: narrow (num_classes-wide) output; masked stores are negligible in
    # this DMA-bound kernel.
    o = jnp.dot(h.astype(jnp.bfloat16), w2_ref[...],
                preferred_element_type=jnp.float32)
    o_ref[...] = (o + b2_ref[...]).astype(o_ref.dtype)


def _choose_tile_b(batch, tile_b):
    """Batch tile: multiple of 8 sublanes; >=2 tiles for non-tiny batches so
    both v7x TensorCores get work; capped at tile_b."""
    b_aligned = _round_up(batch, 8)
    if b_aligned <= 16:
        return b_aligned
    half = _round_up((batch + 1) // 2, 8)
    return max(8, min(tile_b, half))


@functools.partial(jax.jit, static_argnames=("tile_b",))
def fully_connected_nn(x, w1, b1, w2, b2, *, tile_b=4096):
    """x: [B, input_dim] f32; w1: [D_in, H]; b1: [H] or [1, H];
    w2: [H, C]; b2: [C] or [1, C]. Returns [B, C] f32."""
    B, d_in = x.shape
    H = w1.shape[1]
    C = w2.shape[1]

    b1 = b1.reshape(1, H).astype(jnp.float32)
    b2 = b2.reshape(1, C).astype(jnp.float32)

    # Weights are tiny and stay resident in VMEM across all grid steps; cast
    # them (once) to bf16 for the MXU.  x stays f32 and is cast in-kernel.
    w1_bf = w1.astype(jnp.bfloat16)
    w2_bf = w2.astype(jnp.bfloat16)

    tile_b_eff = _choose_tile_b(B, tile_b)
    n_tiles = pl.cdiv(B, tile_b_eff)   # ragged last tile handled by clipping

    cost = pl.CostEstimate(
        flops=2 * B * (d_in * H + H * C),
        transcendentals=0,
        bytes_accessed=(B * d_in * 4            # x read (f32)
                        + d_in * H * 2          # w1 (bf16)
                        + H * 4 + C * 4         # biases (f32)
                        + H * C * 2             # w2 (bf16)
                        + B * C * 4),           # output write (f32)
    )

    out = pl.pallas_call(
        _mlp_kernel,
        out_shape=jax.ShapeDtypeStruct((B, C), jnp.float32),
        grid=(n_tiles,),
        in_specs=[
            pl.BlockSpec((tile_b_eff, d_in), lambda i: (i, 0)),   # x tile
            pl.BlockSpec((d_in, H), lambda i: (0, 0)),            # w1 resident
            pl.BlockSpec((1, H), lambda i: (0, 0)),               # b1 resident
            pl.BlockSpec((H, C), lambda i: (0, 0)),               # w2 resident
            pl.BlockSpec((1, C), lambda i: (0, 0)),               # b2 resident
        ],
        out_specs=pl.BlockSpec((tile_b_eff, C), lambda i: (i, 0)),
        compiler_params=pltpu.CompilerParams(
            dimension_semantics=("parallel",),
            # ~13 MiB peak at tile_b=4096 (double-buffered x tiles + f32/bf16
            # temporaries); 32 MiB scoped cap is safe on v5e/v6e/v7x.
            vmem_limit_bytes=32 * 1024 * 1024,
        ),
        cost_estimate=cost,
    )(x, w1_bf, b1, w2_bf, b2)

    return out


def init_params(key, input_dim=256, hidden_dim=128, num_classes=2):
    """Deterministic init mimicking torch.nn.Linear (U[-1/sqrt(fan_in), +]);
    weights stored [in, out] so the kernel computes x @ W directly."""
    k1, k2, k3, k4 = jax.random.split(key, 4)
    bound1 = 1.0 / (input_dim ** 0.5)
    bound2 = 1.0 / (hidden_dim ** 0.5)
    w1 = jax.random.uniform(k1, (input_dim, hidden_dim), jnp.float32, -bound1, bound1)
    b1 = jax.random.uniform(k2, (1, hidden_dim), jnp.float32, -bound1, bound1)
    w2 = jax.random.uniform(k3, (hidden_dim, num_classes), jnp.float32, -bound2, bound2)
    b2 = jax.random.uniform(k4, (1, num_classes), jnp.float32, -bound2, bound2)
    return w1, b1, w2, b2


if __name__ == "__main__":
    key = jax.random.PRNGKey(0)
    kx, kp = jax.random.split(key)

    input_dim, hidden_dim, num_classes = 256, 128, 2
    batch = 8  # small demo batch

    x = jax.random.normal(kx, (batch, input_dim), jnp.float32)
    w1, b1, w2, b2 = init_params(kp, input_dim, hidden_dim, num_classes)

    out = fully_connected_nn(x, w1, b1, w2, b2)
    out = jax.block_until_ready(out)

    # Pure-JAX reference emulating the kernel's numerics
    # (bf16-rounded MXU inputs, f32 accumulation, f32 epilogue).
    # NOTE: intentionally not bit-matching pure-f32 torch (bf16 MXU inputs).
    xb = x.astype(jnp.bfloat16).astype(jnp.float32)
    w1b = w1.astype(jnp.bfloat16).astype(jnp.float32)
    w2b = w2.astype(jnp.bfloat16).astype(jnp.float32)
    h_ref = jnp.maximum(xb @ w1b + b1, 0.0)
    ref = h_ref.astype(jnp.bfloat16).astype(jnp.float32) @ w2b + b2

    assert out.shape == (batch, num_classes)
    assert jnp.allclose(out, ref, atol=1e-3, rtol=1e-3), (
        float(jnp.max(jnp.abs(out - ref))))

    print("KERNEL_OK")
</pallas_src>

<mosaic_0001>
module attributes {stable_mosaic.version = 11 : i64} {
  func.func @_mlp_kernel(%arg0: i32, %arg1: memref<8x256xf32, #tpu.memory_space<vmem>>, %arg2: memref<256x128xbf16, #tpu.memory_space<vmem>>, %arg3: memref<1x128xf32, #tpu.memory_space<vmem>>, %arg4: memref<128x2xbf16, #tpu.memory_space<vmem>>, %arg5: memref<1x2xf32, #tpu.memory_space<vmem>>, %arg6: memref<8x2xf32, #tpu.memory_space<vmem>>) attributes {dimension_semantics = [#tpu.dimension_semantics<parallel>], iteration_bounds = array<i64: 1>, scalar_prefetch = 0 : i64, scratch_operands = 0 : i64, tpu.core_type = #tpu.core_type<tc>, window_params = [{transform_indices = @transform_0, window_bounds = array<i64: 8, 256>}, {pipeline_mode = #tpu.pipeline_mode<synchronous>, transform_indices = @transform_1, window_bounds = array<i64: 256, 128>}, {pipeline_mode = #tpu.pipeline_mode<synchronous>, transform_indices = @transform_2, window_bounds = array<i64: 1, 128>}, {pipeline_mode = #tpu.pipeline_mode<synchronous>, transform_indices = @transform_3, window_bounds = array<i64: 128, 2>}, {pipeline_mode = #tpu.pipeline_mode<synchronous>, transform_indices = @transform_4, window_bounds = array<i64: 1, 2>}, {transform_indices = @transform_5, window_bounds = array<i64: 8, 2>}]} {
    %c0 = arith.constant 0 : index
    %c0_0 = arith.constant 0 : index
    %0 = vector.load %arg1[%c0, %c0_0] : memref<8x256xf32, #tpu.memory_space<vmem>>, vector<8x256xf32>
    %1 = arith.truncf %0 : vector<8x256xf32> to vector<8x256xbf16>
    %c0_1 = arith.constant 0 : index
    %c0_2 = arith.constant 0 : index
    %2 = vector.load %arg2[%c0_1, %c0_2] : memref<256x128xbf16, #tpu.memory_space<vmem>>, vector<256x128xbf16>
    %cst = arith.constant dense<0.000000e+00> : vector<8x128xf32>
    %3 = tpu.matmul %1, %2, %cst {dimension_numbers = #tpu.dot_dimension_numbers<[1], [0], [0], [1], [0, 0, 1, 1], [], []>} : vector<8x256xbf16>, vector<256x128xbf16>, vector<8x128xf32> -> vector<8x128xf32>
    %c0_3 = arith.constant 0 : index
    %c0_4 = arith.constant 0 : index
    %4 = vector.load %arg3[%c0_3, %c0_4] : memref<1x128xf32, #tpu.memory_space<vmem>>, vector<1x128xf32>
    %5 = vector.broadcast %4 : vector<1x128xf32> to vector<8x128xf32>
    %6 = arith.addf %3, %5 : vector<8x128xf32>
    %cst_5 = arith.constant 0.000000e+00 : f32
    %7 = vector.broadcast %cst_5 : f32 to vector<8x128xf32>
    %8 = arith.maximumf %6, %7 : vector<8x128xf32>
    %9 = arith.truncf %8 : vector<8x128xf32> to vector<8x128xbf16>
    %c0_6 = arith.constant 0 : index
    %c0_7 = arith.constant 0 : index
    %10 = vector.load %arg4[%c0_6, %c0_7] : memref<128x2xbf16, #tpu.memory_space<vmem>>, vector<128x2xbf16>
    %cst_8 = arith.constant dense<0.000000e+00> : vector<8x2xf32>
    %11 = tpu.matmul %9, %10, %cst_8 {dimension_numbers = #tpu.dot_dimension_numbers<[1], [0], [0], [1], [0, 0, 1, 1], [], []>} : vector<8x128xbf16>, vector<128x2xbf16>, vector<8x2xf32> -> vector<8x2xf32>
    %c0_9 = arith.constant 0 : index
    %c0_10 = arith.constant 0 : index
    %12 = vector.load %arg5[%c0_9, %c0_10] : memref<1x2xf32, #tpu.memory_space<vmem>>, vector<1x2xf32>
    %13 = vector.broadcast %12 : vector<1x2xf32> to vector<8x2xf32>
    %14 = arith.addf %11, %13 : vector<8x2xf32>
    %c0_11 = arith.constant 0 : index
    %c0_12 = arith.constant 0 : index
    %15 = vector.load %arg6[%c0_11, %c0_12] : memref<8x2xf32, #tpu.memory_space<vmem>>, vector<8x2xf32>
    tpu.vector_store %arg6[%c0_11, %c0_12], %14 {strides = array<i32>} : memref<8x2xf32, #tpu.memory_space<vmem>>, vector<8x2xf32>,
    return
  }
  func.func @transform_0(%arg0: i32) -> (i32, i32) {
    %c0_i32 = arith.constant 0 : i32
    %c0_i32_0 = arith.constant 0 : i32
    return %arg0, %c0_i32 : i32, i32
  }
  func.func @transform_1(%arg0: i32) -> (i32, i32) {
    %c0_i32 = arith.constant 0 : i32
    %c0_i32_0 = arith.constant 0 : i32
    %c0_i32_1 = arith.constant 0 : i32
    return %c0_i32, %c0_i32_0 : i32, i32
  }
  func.func @transform_2(%arg0: i32) -> (i32, i32) {
    %c0_i32 = arith.constant 0 : i32
    %c0_i32_0 = arith.constant 0 : i32
    %c0_i32_1 = arith.constant 0 : i32
    return %c0_i32, %c0_i32_0 : i32, i32
  }
  func.func @transform_3(%arg0: i32) -> (i32, i32) {
    %c0_i32 = arith.constant 0 : i32
    %c0_i32_0 = arith.constant 0 : i32
    %c0_i32_1 = arith.constant 0 : i32
    return %c0_i32, %c0_i32_0 : i32, i32
  }
  func.func @transform_4(%arg0: i32) -> (i32, i32) {
    %c0_i32 = arith.constant 0 : i32
    %c0_i32_0 = arith.constant 0 : i32
    %c0_i32_1 = arith.constant 0 : i32
    return %c0_i32, %c0_i32_0 : i32, i32
  }
  func.func @transform_5(%arg0: i32) -> (i32, i32) {
    %c0_i32 = arith.constant 0 : i32
    %c0_i32_0 = arith.constant 0 : i32
    return %arg0, %c0_i32 : i32, i32
  }
}

</mosaic_0001>

<llo_original>
// kernel: fully_connected_nn.1
$region0: #{fully_connected_nn.1}
  #allocation0 [shape = 'u32[]', space=smem, size = 0x4, offset = 0x4, fixed_abs, tag = 'smem constant byte address 0x4 - core index']
  #allocation1 [shape = 'u32[144,128]{1,0:T(1,128)}', space=vmem, size = 0x12000, scoped, tag = 'internal scratch']
  %s0 = inlined_call_operand.vmem [shape: f32[8,256], index: 0, kind: input, shape index: {}]
  %s1 = inlined_call_operand.vmem [shape: bf16[256,128], index: 1, kind: input, shape index: {}]
  %s2 = inlined_call_operand.vmem [shape: f32[1,128], index: 2, kind: input, shape index: {}]
  %s3 = inlined_call_operand.vmem [shape: bf16[128,2], index: 3, kind: input, shape index: {}]
  %s4 = inlined_call_operand.vmem [shape: f32[1,2], index: 4, kind: input, shape index: {}]
  %s5 = inlined_call_operand.vmem [shape: f32[8,2], index: 5, kind: output, shape index: {}]
  %s6 = sld [smem:[#allocation0]]
  $region30: #{fully_connected_nn.1} parent=0
    _
  %s8 = ssub.s32 1, %s6
  %s9 = scalar_select 0, %s8, %s6
  // Predicated region
  $region2: #{fully_connected_nn.1} parent=0 // pred_check
    _
  $region3: #{fully_connected_nn.1} parent=0 // pred_check_branch
    %11 = sbr.rel (0) target = $region5
  $region4: #{fully_connected_nn.1} parent=0 // pred_region
    _
  $region5: #{fully_connected_nn.1} parent=0 // pred_fallthru
    _
  // Predicated region
  $region6: #{fully_connected_nn.1} parent=0 // pred_check
    _
  $region7: #{fully_connected_nn.1} parent=0 // pred_check_branch
    %13 = sbr.rel (0) target = $region9
  $region8: #{fully_connected_nn.1} parent=0 // pred_region
    _
  $region9: #{fully_connected_nn.1} parent=0 // pred_fallthru
    _
  // Predicated region
  $region10: #{fully_connected_nn.1} parent=0 // pred_check
    _
  $region11: #{fully_connected_nn.1} parent=0 // pred_check_branch
    %15 = sbr.rel (0) target = $region13
  $region12: #{fully_connected_nn.1} parent=0 // pred_region
    _
  $region13: #{fully_connected_nn.1} parent=0 // pred_fallthru
    _
  // Predicated region
  $region14: #{fully_connected_nn.1} parent=0 // pred_check
    _
  $region15: #{fully_connected_nn.1} parent=0 // pred_check_branch
    %17 = sbr.rel (0) target = $region17
  $region16: #{fully_connected_nn.1} parent=0 // pred_region
    _
  $region17: #{fully_connected_nn.1} parent=0 // pred_fallthru
    _
  // Predicated region
  $region18: #{fully_connected_nn.1} parent=0 // pred_check
    _
  $region19: #{fully_connected_nn.1} parent=0 // pred_check_branch
    %19 = sbr.rel (0) target = $region21
  $region20: #{fully_connected_nn.1} parent=0 // pred_region
    _
  $region21: #{fully_connected_nn.1} parent=0 // pred_fallthru
    _
  %v21 = vld [vmem:[%s0] sm:$0xff]
  %v22 = vld [vmem:[%s0 + $0x8] sm:$0xff]
  %v23 = vpack.c.bf16 %v21, %v21
  %v24 = vpack.c.bf16 %v22, %v22
  %v25 = vld [vmem:[%s1] sm:$0xf]
  %v26 = vld [vmem:[%s1 + $0x4] sm:$0xf]
  %v27 = vld [vmem:[%s1 + $0x8] sm:$0xf]
  %v28 = vld [vmem:[%s1 + $0xc] sm:$0xf]
  %v29 = vld [vmem:[%s1 + $0x10] sm:$0xf]
  %v30 = vld [vmem:[%s1 + $0x14] sm:$0xf]
  %v31 = vld [vmem:[%s1 + $0x18] sm:$0xf]
  %v32 = vld [vmem:[%s1 + $0x1c] sm:$0xf]
  %v33 = vld [vmem:[%s1 + $0x20] sm:$0xf]
  %v34 = vld [vmem:[%s1 + $0x24] sm:$0xf]
  %v35 = vld [vmem:[%s1 + $0x28] sm:$0xf]
  %v36 = vld [vmem:[%s1 + $0x2c] sm:$0xf]
  %v37 = vld [vmem:[%s1 + $0x30] sm:$0xf]
  %v38 = vld [vmem:[%s1 + $0x34] sm:$0xf]
  %v39 = vld [vmem:[%s1 + $0x38] sm:$0xf]
  %v40 = vld [vmem:[%s1 + $0x3c] sm:$0xf]
  %v41 = vld [vmem:[%s1 + $0x40] sm:$0xf]
  %v42 = vld [vmem:[%s1 + $0x44] sm:$0xf]
  %v43 = vld [vmem:[%s1 + $0x48] sm:$0xf]
  %v44 = vld [vmem:[%s1 + $0x4c] sm:$0xf]
  %v45 = vld [vmem:[%s1 + $0x50] sm:$0xf]
  %v46 = vld [vmem:[%s1 + $0x54] sm:$0xf]
  %v47 = vld [vmem:[%s1 + $0x58] sm:$0xf]
  %v48 = vld [vmem:[%s1 + $0x5c] sm:$0xf]
  %v49 = vld [vmem:[%s1 + $0x60] sm:$0xf]
  %v50 = vld [vmem:[%s1 + $0x64] sm:$0xf]
  %v51 = vld [vmem:[%s1 + $0x68] sm:$0xf]
  %v52 = vld [vmem:[%s1 + $0x6c] sm:$0xf]
  %v53 = vld [vmem:[%s1 + $0x70] sm:$0xf]
  %v54 = vld [vmem:[%s1 + $0x74] sm:$0xf]
  %v55 = vld [vmem:[%s1 + $0x78] sm:$0xf]
  %v56 = vld [vmem:[%s1 + $0x7c] sm:$0xf]
  %v57 = vld [vmem:[%s2] sm:$0x1]
  %v59 = vlaneseq
  %v60 = vshrl.u32 %v59, 7
  %v61 = vsub.s32 0, %v60
  %v62 = vrot.slane %v57, %v61
  %v96 = vunpack.c.l.b16 %v25
  %v97 = vunpack.c.l.b16 %v26
  %v98 = vunpack.c.l.b16 %v27
  %v99 = vunpack.c.l.b16 %v28
  %v100 = vunpack.c.l.b16 %v29
  %v101 = vunpack.c.l.b16 %v30
  %v102 = vunpack.c.l.b16 %v31
  %v103 = vunpack.c.l.b16 %v32
  %v104 = vunpack.c.l.b16 %v33
  %v105 = vunpack.c.l.b16 %v34
  %v106 = vunpack.c.l.b16 %v35
  %v107 = vunpack.c.l.b16 %v36
  %v108 = vunpack.c.l.b16 %v37
  %v109 = vunpack.c.l.b16 %v38
  %v110 = vunpack.c.l.b16 %v39
  %v111 = vunpack.c.l.b16 %v40
  %v112 = vunpack.c.l.b16 %v41
  %v113 = vunpack.c.l.b16 %v42
  %v114 = vunpack.c.l.b16 %v43
  %v115 = vunpack.c.l.b16 %v44
  %v116 = vunpack.c.l.b16 %v45
  %v117 = vunpack.c.l.b16 %v46
  %v118 = vunpack.c.l.b16 %v47
  %v119 = vunpack.c.l.b16 %v48
  %v120 = vunpack.c.l.b16 %v49
  %v121 = vunpack.c.l.b16 %v50
  %v122 = vunpack.c.l.b16 %v51
  %v123 = vunpack.c.l.b16 %v52
  %v124 = vunpack.c.l.b16 %v53
  %v125 = vunpack.c.l.b16 %v54
  %v126 = vunpack.c.l.b16 %v55
  %v127 = vunpack.c.l.b16 %v56
  %v128 = vpack.c.b16 %v97, %v96
  %v129 = vpack.c.b16 %v99, %v98
  %v130 = vpack.c.b16 %v101, %v100
  %v131 = vpack.c.b16 %v103, %v102
  %v132 = vpack.c.b16 %v105, %v104
  %v133 = vpack.c.b16 %v107, %v106
  %v134 = vpack.c.b16 %v109, %v108
  %v135 = vpack.c.b16 %v111, %v110
  %v136 = vpack.c.b16 %v113, %v112
  %v137 = vpack.c.b16 %v115, %v114
  %v138 = vpack.c.b16 %v117, %v116
  %v139 = vpack.c.b16 %v119, %v118
  %v140 = vpack.c.b16 %v121, %v120
  %v141 = vpack.c.b16 %v123, %v122
  %v142 = vpack.c.b16 %v125, %v124
  %v143 = vpack.c.b16 %v127, %v126
  %160 = vmatprep.subr.bf16.mxu0 0
  %161 = vmatpush1.bf16.msra.mxu0 %v128
  %162 = vmatprep.subr.bf16.mxu0 0
  %163 = vmatpush1.bf16.msra.mxu0 %v129
  %164 = vmatprep.subr.bf16.mxu0 0
  %165 = vmatpush1.bf16.msra.mxu0 %v130
  %166 = vmatprep.subr.bf16.mxu0 0
  %167 = vmatpush1.bf16.msra.mxu0 %v131
  %168 = vmatprep.subr.bf16.mxu0 0
  %169 = vmatpush1.bf16.msra.mxu0 %v132
  %170 = vmatprep.subr.bf16.mxu0 0
  %171 = vmatpush1.bf16.msra.mxu0 %v133
  %172 = vmatprep.subr.bf16.mxu0 0
  %173 = vmatpush1.bf16.msra.mxu0 %v134
  %174 = vmatprep.subr.bf16.mxu0 0
  %175 = vmatpush1.bf16.msra.mxu0 %v135
  %176 = vmatprep.subr.bf16.mxu0 0
  %177 = vmatpush1.bf16.msra.mxu0 %v136
  %178 = vmatprep.subr.bf16.mxu0 0
  %179 = vmatpush1.bf16.msra.mxu0 %v137
  %180 = vmatprep.subr.bf16.mxu0 0
  %181 = vmatpush1.bf16.msra.mxu0 %v138
  %182 = vmatprep.subr.bf16.mxu0 0
  %183 = vmatpush1.bf16.msra.mxu0 %v139
  %184 = vmatprep.subr.bf16.mxu0 0
  %185 = vmatpush1.bf16.msra.mxu0 %v140
  %186 = vmatprep.subr.bf16.mxu0 0
  %187 = vmatpush1.bf16.msra.mxu0 %v141
  %188 = vmatprep.subr.bf16.mxu0 0
  %189 = vmatpush1.bf16.msra.mxu0 %v142
  %190 = vmatprep.subr.bf16.mxu0 0
  %191 = vmatpush1.bf16.msra.mxu0 %v143
  %192 = vmatprep.mubr.bf16.mxu0 %v24
  %193 = vmatmul.mubr.bf16.gmra.mrb[0].mxu0 %v23
  %v194 = vpop.f32.mrb[0].mxu0
  %v195 = vadd.f32 %v62, %v194
  %v196 = vpop.f32.mrb[0].mxu0
  %v197 = vpop.f32.mrb[0].mxu0
  %v198 = vpop.f32.mrb[0].mxu0
  %199 = vdwg.mxu0
  %v200 = vmax.f32 %v195, 0.0
  %v201 = vpack.c.bf16 %v200, %v200
  %v202 = vld [vmem:[%s3] sm:$0xf]
  %v203 = vld [vmem:[%s3 + $0x4] sm:$0xf]
  %v204 = vld [vmem:[%s3 + $0x8] sm:$0xf]
  %v205 = vld [vmem:[%s3 + $0xc] sm:$0xf]
  %v206 = vld [vmem:[%s3 + $0x10] sm:$0xf]
  %v207 = vld [vmem:[%s3 + $0x14] sm:$0xf]
  %v208 = vld [vmem:[%s3 + $0x18] sm:$0xf]
  %v209 = vld [vmem:[%s3 + $0x1c] sm:$0xf]
  %v210 = vld [vmem:[%s3 + $0x20] sm:$0xf]
  %v211 = vld [vmem:[%s3 + $0x24] sm:$0xf]
  %v212 = vld [vmem:[%s3 + $0x28] sm:$0xf]
  %v213 = vld [vmem:[%s3 + $0x2c] sm:$0xf]
  %v214 = vld [vmem:[%s3 + $0x30] sm:$0xf]
  %v215 = vld [vmem:[%s3 + $0x34] sm:$0xf]
  %v216 = vld [vmem:[%s3 + $0x38] sm:$0xf]
  %v217 = vld [vmem:[%s3 + $0x3c] sm:$0xf]
  %v218 = vld [vmem:[%s4] sm:$0x1]
  %v220 = vlaneseq
  %v221 = vshrl.u32 %v220, 7
  %v222 = vsub.s32 0, %v221
  %v223 = vrot.slane %v218, %v222
  %v241 = vunpack.c.l.b16 %v202
  %v242 = vunpack.c.l.b16 %v203
  %v243 = vunpack.c.l.b16 %v204
  %v244 = vunpack.c.l.b16 %v205
  %v245 = vunpack.c.l.b16 %v206
  %v246 = vunpack.c.l.b16 %v207
  %v247 = vunpack.c.l.b16 %v208
  %v248 = vunpack.c.l.b16 %v209
  %v249 = vunpack.c.l.b16 %v210
  %v250 = vunpack.c.l.b16 %v211
  %v251 = vunpack.c.l.b16 %v212
  %v252 = vunpack.c.l.b16 %v213
  %v253 = vunpack.c.l.b16 %v214
  %v254 = vunpack.c.l.b16 %v215
  %v255 = vunpack.c.l.b16 %v216
  %v256 = vunpack.c.l.b16 %v217
  %v257 = vpack.c.b16 %v242, %v241
  %v258 = vpack.c.b16 %v244, %v243
  %v259 = vpack.c.b16 %v246, %v245
  %v260 = vpack.c.b16 %v248, %v247
  %v261 = vpack.c.b16 %v250, %v249
  %v262 = vpack.c.b16 %v252, %v251
  %v263 = vpack.c.b16 %v254, %v253
  %v264 = vpack.c.b16 %v256, %v255
  %273 = vmatprep.subr.bf16.mxu0 0
  %274 = vmatpush1.bf16.msra.mxu0 %v257
  %275 = vmatprep.subr.bf16.mxu0 0
  %276 = vmatpush1.bf16.msra.mxu0 %v258
  %277 = vmatprep.subr.bf16.mxu0 0
  %278 = vmatpush1.bf16.msra.mxu0 %v259
  %279 = vmatprep.subr.bf16.mxu0 0
  %280 = vmatpush1.bf16.msra.mxu0 %v260
  %281 = vmatprep.subr.bf16.mxu0 0
  %282 = vmatpush1.bf16.msra.mxu0 %v261
  %283 = vmatprep.subr.bf16.mxu0 0
  %284 = vmatpush1.bf16.msra.mxu0 %v262
  %285 = vmatprep.subr.bf16.mxu0 0
  %286 = vmatpush1.bf16.msra.mxu0 %v263
  %287 = vmatprep.subr.bf16.mxu0 0
  %288 = vmatpush1.bf16.msra.mxu0 %v264
  %289 = vmatprep.subr.bf16.mxu0 0
  %290 = vmatpush1.bf16.msra.mxu0 0
  %291 = vmatprep.subr.bf16.mxu0 0
  %292 = vmatpush1.bf16.msra.mxu0 0
  %293 = vmatprep.subr.bf16.mxu0 0
  %294 = vmatpush1.bf16.msra.mxu0 0
  %295 = vmatprep.subr.bf16.mxu0 0
  %296 = vmatpush1.bf16.msra.mxu0 0
  %297 = vmatprep.subr.bf16.mxu0 0
  %298 = vmatpush1.bf16.msra.mxu0 0
  %299 = vmatprep.subr.bf16.mxu0 0
  %300 = vmatpush1.bf16.msra.mxu0 0
  %301 = vmatprep.subr.bf16.mxu0 0
  %302 = vmatpush1.bf16.msra.mxu0 0
  %303 = vmatprep.subr.bf16.mxu0 0
  %304 = vmatpush1.bf16.msra.mxu0 0
  %305 = vmatprep.mubr.bf16.mxu0 0
  %306 = vmatmul.mubr.bf16.gmra.mrb[0].mxu0 %v201
  %v307 = vpop.f32.mrb[0].mxu0
  %v308 = vadd.f32 %v223, %v307
  %v309 = vpop.f32.mrb[0].mxu0
  %v310 = vpop.f32.mrb[0].mxu0
  %v311 = vpop.f32.mrb[0].mxu0
  %312 = vdwg.mxu0
  %vm313 = vcmask 15360
  %314 = vst.msk [vmem:[%s5] sm:$0xff] %vm313, %v308
  // Predicated region
  $region22: #{fully_connected_nn.1} parent=0 // pred_check
    _
  $region23: #{fully_connected_nn.1} parent=0 // pred_check_branch
    %316 = sbr.rel (0) target = $region25
  $region24: #{fully_connected_nn.1} parent=0 // pred_region
    _
  $region25: #{fully_connected_nn.1} parent=0 // pred_fallthru
    _
  // Predicated region
  $region26: #{fully_connected_nn.1} parent=0 // pred_check
    _
  $region27: #{fully_connected_nn.1} parent=0 // pred_check_branch
    %318 = sbr.rel (0) target = $region29
  $region28: #{fully_connected_nn.1} parent=0 // pred_region
    _
  $region29: #{fully_connected_nn.1} parent=0 // pred_fallthru
    _

</llo_original>
